<compile_context>
chip_gen: v5e
topology: v5e:2x2
jax: 0.10.0
libtpu: 0.0.40
codegen_flags: <defaults>
</compile_context>

<pallas_src>
import math

import jax
import jax.numpy as jnp
from jax import lax
from jax.experimental import pallas as pl
from jax.experimental.pallas import tpu as pltpu


def _round_up(x, m):
    return (x + m - 1) // m * m


def _choose_tile(dim, align, cap):
    """Largest multiple of `align` that divides `dim` (dim is a multiple of
    `align`) and is <= max(align, min(cap, dim)).  Divisor-based so the padded
    dims never grow past the 128 / sublane alignment."""
    hi = max(align, min(cap, dim))
    t = (hi // align) * align
    while t > align:
        if dim % t == 0:
            return t
        t -= align
    return align


# Contract K of x(tm, tk) with K of w(tn, tk): x @ w^T, no weight transpose.
_DIMNUMS = (((1,), (1,)), ((), ()))


def _make_fullk_kernel(has_bias):
    """2-D grid (no K axis): o = x @ w.T (+ bias).  No accumulator scratch and
    no init/finalize branches — the decode / small-K fast path."""
    def body(x_ref, w_ref, b_ref, o_ref):
        res = lax.dot_general(x_ref[...], w_ref[...],
                              dimension_numbers=_DIMNUMS,
                              preferred_element_type=jnp.float32)
        if has_bias:
            res = res + b_ref[...]
        o_ref[...] = res.astype(o_ref.dtype)

    if has_bias:
        return lambda x, w, b, o: body(x, w, b, o)
    return lambda x, w, o: body(x, w, None, o)


def _make_ktile_kernel(has_bias, use_scratch):
    """3-D grid (M, N, K): accumulate over K.  If the output dtype is f32 the
    resident output block itself is the accumulator (no scratch / final copy)."""
    def body(x_ref, w_ref, b_ref, o_ref, acc_ref):
        k = pl.program_id(2)
        acc = acc_ref if use_scratch else o_ref

        @pl.when(k == 0)
        def _():
            acc[...] = jnp.zeros_like(acc)

        acc[...] += lax.dot_general(x_ref[...], w_ref[...],
                                    dimension_numbers=_DIMNUMS,
                                    preferred_element_type=jnp.float32)

        if use_scratch or has_bias:
            @pl.when(k == pl.num_programs(2) - 1)
            def _():
                res = acc[...]
                if has_bias:
                    res = res + b_ref[...]
                o_ref[...] = res.astype(o_ref.dtype)

    if has_bias and use_scratch:
        return lambda x, w, b, o, a: body(x, w, b, o, a)
    if has_bias:
        return lambda x, w, b, o: body(x, w, b, o, None)
    if use_scratch:
        return lambda x, w, o, a: body(x, w, None, o, a)
    return lambda x, w, o: body(x, w, None, o, None)


def linear_row_1d(x, weight, bias=None, *, compute_dtype=None):
    """Pallas forward of LinearRow1D at world_size == 1.

    x            : (..., in_features)
    weight       : (out_features, in_features)   -- PyTorch nn.Linear convention
    bias         : (out_features,) or None
    compute_dtype: optional MXU feed dtype (pass jnp.bfloat16 for MXU-rate
                   throughput; accumulation stays f32, output keeps x.dtype).
                   Store the weight in this dtype to avoid a per-call HBM cast.
    returns      : (..., out_features)
    """
    in_features = x.shape[-1]
    out_features, w_in = weight.shape
    assert w_in == in_features, (w_in, in_features)

    lead = x.shape[:-1]
    m = int(math.prod(lead)) if lead else 1
    out_dtype = x.dtype

    # ---- degenerate shapes: avoid zero-sized tiles / grids -----------------
    if m == 0 or out_features == 0:
        return jnp.zeros((*lead, out_features), out_dtype)
    if in_features == 0:
        out = jnp.zeros((m, out_features), jnp.float32)
        if bias is not None:
            out = out + bias.astype(jnp.float32)[None, :]
        return out.astype(out_dtype).reshape(*lead, out_features)

    x2d = x.reshape(m, in_features)
    w = weight
    if compute_dtype is not None:
        if x2d.dtype != compute_dtype:
            x2d = x2d.astype(compute_dtype)
        if w.dtype != compute_dtype:
            # Per-call HBM copy of the full weight; store parameters in
            # compute_dtype (see demo) so this branch never triggers.
            w = w.astype(compute_dtype)

    has_bias = bias is not None
    x_bytes = jnp.dtype(x2d.dtype).itemsize
    w_bytes = jnp.dtype(w.dtype).itemsize
    o_bytes = jnp.dtype(out_dtype).itemsize
    # f32 output -> accumulate directly into the resident output block.
    use_scratch = out_dtype != jnp.float32

    # Sublane packing of the narrowest dtype in a second-to-last block dim.
    sub = max(8, 32 // min(x_bytes, o_bytes))

    m_al = _round_up(m, sub)
    n_al = _round_up(out_features, 128)
    k_al = _round_up(in_features, 128)

    # ---- generation-aware VMEM budget ---------------------------------------
    try:
        vmem_cap = int(pltpu.get_tpu_info().vmem_capacity_bytes)
    except Exception:
        vmem_cap = 64 * 1024 * 1024            # v7x-conservative fallback
    budget = int(0.55 * vmem_cap)              # headroom for compiler scratch

    def footprint(tm, tn, tk):
        f = 2 * (tm * tk * x_bytes + tn * tk * w_bytes + tm * tn * o_bytes)
        if use_scratch:
            f += tm * tn * 4
        if has_bias:
            f += 2 * tn * 4
        return f

    # ---- tile selection: big, lane-dense, divisor-based ---------------------
    tm_cap, tn_cap, tk_cap = 512, 512, 2048
    while True:
        tm = _choose_tile(m_al, sub, tm_cap)
        tn = _choose_tile(n_al, 128, tn_cap)
        tk = _choose_tile(k_al, 128, tk_cap)
        if footprint(tm, tn, tk) <= budget:
            break
        if tk_cap > 256:
            tk_cap //= 2
        elif tn_cap > 128:
            tn_cap //= 2
        elif tm_cap > sub:
            tm_cap = max(sub, tm_cap // 2)
        else:
            break

    # ---- megacore load balance (v7x: 2 TCs share the parallel grid axes) ----
    if (m_al // tm) * (n_al // tn) < 2 and m_al * n_al * k_al >= (1 << 24):
        if n_al >= 2 * 128:
            tn = _choose_tile(n_al, 128, max(128, (n_al // 2 // 128) * 128))
        elif m_al >= 2 * sub:
            tm = _choose_tile(m_al, sub, max(sub, (m_al // 2 // sub) * sub))

    # ---- decode-like fast path: fold all of K into a single block ----------
    if m_al // tm == 1 and footprint(tm, tn, k_al) <= budget:
        tk = k_al

    grid_m, grid_n, grid_k = m_al // tm, n_al // tn, k_al // tk

    # ---- padding: no-op for aligned shapes; weight only padded when N or K
    #      are ragged w.r.t. 128 (tiles always divide the aligned dims) -------
    if (m_al, k_al) != (m, in_features):
        x2d = jnp.pad(x2d, ((0, m_al - m), (0, k_al - in_features)))
    if (n_al, k_al) != (out_features, in_features):
        w = jnp.pad(w, ((0, n_al - out_features), (0, k_al - in_features)))

    vmem_limit = int(min(0.85 * vmem_cap,
                         max(1.4 * footprint(tm, tn, tk), 32 * 1024 * 1024)))

    cost = pl.CostEstimate(
        flops=2 * m * in_features * out_features,
        transcendentals=0,
        # Real streaming: x re-read per N block, weight re-read per M block.
        bytes_accessed=(m * in_features * x_bytes * grid_n
                        + out_features * in_features * w_bytes * grid_m
                        + m * out_features * o_bytes
                        + (out_features * 4 * grid_m if has_bias else 0)))

    inputs = [x2d, w]
    if has_bias:
        # Bias kept in f32: no precision loss through a low-precision round-trip.
        b2d = bias.astype(jnp.float32).reshape(1, out_features)
        if n_al != out_features:
            b2d = jnp.pad(b2d, ((0, 0), (0, n_al - out_features)))
        inputs.append(b2d)

    if grid_k == 1:
        grid = (grid_m, grid_n)
        in_specs = [pl.BlockSpec((tm, tk), lambda i, j: (i, 0)),
                    pl.BlockSpec((tn, tk), lambda i, j: (j, 0))]
        if has_bias:
            in_specs.append(pl.BlockSpec((1, tn), lambda i, j: (0, j)))
        out_specs = pl.BlockSpec((tm, tn), lambda i, j: (i, j))
        kernel = _make_fullk_kernel(has_bias)
        scratch = []
        dims = ("parallel", "parallel")
    else:
        grid = (grid_m, grid_n, grid_k)
        in_specs = [pl.BlockSpec((tm, tk), lambda i, j, k: (i, k)),
                    pl.BlockSpec((tn, tk), lambda i, j, k: (j, k))]
        if has_bias:
            in_specs.append(pl.BlockSpec((1, tn), lambda i, j, k: (0, j)))
        out_specs = pl.BlockSpec((tm, tn), lambda i, j, k: (i, j))
        kernel = _make_ktile_kernel(has_bias, use_scratch)
        scratch = [pltpu.VMEM((tm, tn), jnp.float32)] if use_scratch else []
        dims = ("parallel", "parallel", "arbitrary")

    out = pl.pallas_call(
        kernel,
        out_shape=jax.ShapeDtypeStruct((m_al, n_al), out_dtype),
        grid_spec=pltpu.PrefetchScalarGridSpec(
            num_scalar_prefetch=0,
            grid=grid,
            in_specs=in_specs,
            out_specs=out_specs,
            scratch_shapes=scratch),
        compiler_params=pltpu.CompilerParams(
            dimension_semantics=dims,
            vmem_limit_bytes=vmem_limit),
        cost_estimate=cost,
    )(*inputs)

    out = out[:m, :out_features]
    return out.reshape(*lead, out_features)


def init_params(key, in_features, out_features, dtype=jnp.float32):
    """Deterministic init matching LinearRow1D.reset_parameters at world_size=1.

    weight_init = kaiming_uniform(a=sqrt(5)) on master shape (out, in):
        bound = sqrt(6 / ((1 + a^2) * fan_in)) = 1 / sqrt(fan_in)
    bias_init = zeros.
    """
    bound = 1.0 / math.sqrt(in_features)
    weight = jax.random.uniform(
        key, (out_features, in_features), dtype=dtype, minval=-bound, maxval=bound)
    bias = jnp.zeros((out_features,), dtype=dtype)
    return weight, bias


if __name__ == "__main__":
    batch, seq = 2, 8
    in_features, out_features = 32, 64

    key = jax.random.PRNGKey(0)
    kx, kw, kb, kx2, kw2, kb2 = jax.random.split(key, 6)

    x = jax.random.normal(kx, (batch, seq, in_features), dtype=jnp.float32)
    weight, _ = init_params(kw, in_features, out_features, dtype=jnp.float32)
    # Non-zero bias so the bias path is actually exercised numerically.
    bias = jax.random.normal(kb, (out_features,), dtype=jnp.float32) * 0.1

    # Pure-JAX reference (identity all-reduce at world_size=1).
    ref = x @ weight.T + bias
    ref_nb = x @ weight.T

    # 1) f32, with bias (small-K fast path: 2-D grid, no accumulator scratch).
    out = jax.block_until_ready(linear_row_1d(x, weight, bias))
    assert out.shape == (batch, seq, out_features)
    assert jnp.allclose(out, ref, atol=1e-5, rtol=1e-5)

    # 2) f32, bias=None (no dead bias DMA path).
    out_nb = jax.block_until_ready(linear_row_1d(x, weight, None))
    assert jnp.allclose(out_nb, ref_nb, atol=1e-5, rtol=1e-5)

    # 3) bf16 MXU feed with f32 accumulation; weight pre-cast to the compute
    #    dtype so the wrapper performs no per-call HBM weight copy.
    w_bf16 = weight.astype(jnp.bfloat16)
    out_bf = jax.block_until_ready(
        linear_row_1d(x, w_bf16, bias, compute_dtype=jnp.bfloat16))
    assert out_bf.dtype == jnp.float32
    assert jnp.allclose(out_bf, ref, atol=5e-2, rtol=5e-2)

    # 4) Larger bf16-in / bf16-out case exercising the K-tiled path
    #    (grid_k > 1) with the f32 VMEM accumulator scratch and bias.
    M2, K2, N2 = 768, 2560, 512
    x2 = jax.random.normal(kx2, (M2, K2), dtype=jnp.float32).astype(jnp.bfloat16)
    w2 = (jax.random.normal(kw2, (N2, K2), dtype=jnp.float32)
          * (1.0 / math.sqrt(K2))).astype(jnp.bfloat16)
    b2 = jax.random.normal(kb2, (N2,), dtype=jnp.float32) * 0.1
    out2 = jax.block_until_ready(linear_row_1d(x2, w2, b2))
    ref2 = x2.astype(jnp.float32) @ w2.astype(jnp.float32).T + b2
    assert out2.dtype == jnp.bfloat16
    err = float(jnp.max(jnp.abs(out2.astype(jnp.float32) - ref2)))
    assert err < 5e-2, err

    print("KERNEL_OK")
</pallas_src>

<mosaic_0001>
module attributes {stable_mosaic.version = 11 : i64} {
  func.func @_lambda_(%arg0: i32, %arg1: i32, %arg2: memref<16x128xf32, #tpu.memory_space<vmem>>, %arg3: memref<128x128xf32, #tpu.memory_space<vmem>>, %arg4: memref<1x128xf32, #tpu.memory_space<vmem>>, %arg5: memref<16x128xf32, #tpu.memory_space<vmem>>) attributes {dimension_semantics = [#tpu.dimension_semantics<parallel>, #tpu.dimension_semantics<parallel>], iteration_bounds = array<i64: 1, 1>, scalar_prefetch = 0 : i64, scratch_operands = 0 : i64, tpu.core_type = #tpu.core_type<tc>, window_params = [{transform_indices = @transform_0, window_bounds = array<i64: 16, 128>}, {transform_indices = @transform_1, window_bounds = array<i64: 128, 128>}, {transform_indices = @transform_2, window_bounds = array<i64: 1, 128>}, {transform_indices = @transform_3, window_bounds = array<i64: 16, 128>}]} {
    %c0 = arith.constant 0 : index
    %c0_0 = arith.constant 0 : index
    %0 = vector.load %arg2[%c0, %c0_0] : memref<16x128xf32, #tpu.memory_space<vmem>>, vector<16x128xf32>
    %c0_1 = arith.constant 0 : index
    %c0_2 = arith.constant 0 : index
    %1 = vector.load %arg3[%c0_1, %c0_2] : memref<128x128xf32, #tpu.memory_space<vmem>>, vector<128x128xf32>
    %cst = arith.constant dense<0.000000e+00> : vector<16x128xf32>
    %2 = tpu.matmul %0, %1, %cst {dimension_numbers = #tpu.dot_dimension_numbers<[1], [1], [0], [0], [0, 0, 1, 0], [], []>} : vector<16x128xf32>, vector<128x128xf32>, vector<16x128xf32> -> vector<16x128xf32>
    %c0_3 = arith.constant 0 : index
    %c0_4 = arith.constant 0 : index
    %3 = vector.load %arg4[%c0_3, %c0_4] : memref<1x128xf32, #tpu.memory_space<vmem>>, vector<1x128xf32>
    %4 = vector.broadcast %3 : vector<1x128xf32> to vector<16x128xf32>
    %5 = arith.addf %2, %4 : vector<16x128xf32>
    %c0_5 = arith.constant 0 : index
    %c0_6 = arith.constant 0 : index
    %6 = vector.load %arg5[%c0_5, %c0_6] : memref<16x128xf32, #tpu.memory_space<vmem>>, vector<16x128xf32>
    tpu.vector_store %arg5[%c0_5, %c0_6], %5 {strides = array<i32>} : memref<16x128xf32, #tpu.memory_space<vmem>>, vector<16x128xf32>,
    return
  }
  func.func @transform_0(%arg0: i32, %arg1: i32) -> (i32, i32) {
    %c0_i32 = arith.constant 0 : i32
    %c0_i32_0 = arith.constant 0 : i32
    return %arg0, %c0_i32 : i32, i32
  }
  func.func @transform_1(%arg0: i32, %arg1: i32) -> (i32, i32) {
    %c0_i32 = arith.constant 0 : i32
    %c0_i32_0 = arith.constant 0 : i32
    return %arg1, %c0_i32 : i32, i32
  }
  func.func @transform_2(%arg0: i32, %arg1: i32) -> (i32, i32) {
    %c0_i32 = arith.constant 0 : i32
    %c0_i32_0 = arith.constant 0 : i32
    return %c0_i32, %arg1 : i32, i32
  }
  func.func @transform_3(%arg0: i32, %arg1: i32) -> (i32, i32) {
    %c0_i32 = arith.constant 0 : i32
    return %arg0, %arg1 : i32, i32
  }
}

</mosaic_0001>

<llo_original>
// kernel: tpu_custom_call.1
$region0: #{tpu_custom_call.1}
  #allocation0 [shape = 'u32[]', space=smem, size = 0x4, offset = 0x4, fixed_abs, tag = 'smem constant byte address 0x4 - core index']
  #allocation1 [shape = 'u32[72,128]{1,0:T(1,128)}', space=vmem, size = 0x9000, scoped, tag = 'internal scratch']
  %s0 = inlined_call_operand.hbm [shape: f32[16,128], index: 0, kind: input, shape index: {}]
  %s1 = inlined_call_operand.hbm [shape: f32[128,128], index: 1, kind: input, shape index: {}]
  %s2 = inlined_call_operand.vmem [shape: f32[1,128], index: 2, kind: input, shape index: {}]
  %s3 = inlined_call_operand.hbm [shape: f32[16,128], index: 3, kind: output, shape index: {}]
  %s4 = sld [smem:[#allocation0]]
  $region30: #{tpu_custom_call.1} parent=0
    _
  %s6 = ssub.s32 1, %s4
  %s7 = scalar_select 0, %s6, %s4
  $region1: #{tpu_custom_call.1} parent=0
    #allocation2 [shape = 'u8[8192]{0}', space=vmem, size = 0x2000, scoped, tag = 'input window, operand 0, single buffered']
    #allocation3 [shape = 's32[1]{0}', space=sflag, size = 0x4, scoped, tag = 'scoped memory for tpu_custom_call.1']
    #allocation4 [shape = 's32[1]{0}', space=sflag, size = 0x4, scoped, tag = 'scoped memory for tpu_custom_call.1']
    #allocation5 [shape = 'u8[65536]{0}', space=vmem, size = 0x10000, scoped, tag = 'input window, operand 1, single buffered']
    #allocation6 [shape = 's32[1]{0}', space=sflag, size = 0x4, scoped, tag = 'scoped memory for tpu_custom_call.1']
    #allocation7 [shape = 'u8[8192]{0}', space=vmem, size = 0x2000, scoped, tag = 'output window, operand 0, single buffered']
    %8 = vsyncpa [#allocation3], 0
    %9 = vsyncpa [#allocation6], 0
    %10 = vsyncpa [#allocation4], 0
    // Predicated region
    $region2: #{tpu_custom_call.1} parent=1 // pred_check
      _
    $region3: #{tpu_custom_call.1} parent=1 // pred_check_branch
      %12 = sbr.rel (0) target = $region5
    $region4: #{tpu_custom_call.1} parent=1 // pred_region
      %14 = vsyncadd [#allocation3], 0
      %s15 = sshll.u32 %s0, 4
      %s16 = int_to_ptr.hbm [resolvable:$true] %s15
      %s17 = sshll.u32 [#allocation2], 4
      %s18 = int_to_ptr.vmem [resolvable:$true] %s17
      %23 = dma.hbm_to_vmem [thread:$0]  %s16, 256, %s18, [#allocation3], 128, 128, 8
    $region5: #{tpu_custom_call.1} parent=1 // pred_fallthru
      _
    // Predicated region
    $region6: #{tpu_custom_call.1} parent=1 // pred_check
      _
    $region7: #{tpu_custom_call.1} parent=1 // pred_check_branch
      %25 = sbr.rel (0) target = $region9
    $region8: #{tpu_custom_call.1} parent=1 // pred_region
      %27 = vsyncadd [#allocation6], 0
      %s28 = sshll.u32 %s1, 4
      %s29 = int_to_ptr.hbm [resolvable:$true] %s28
      %s30 = sshll.u32 [#allocation5], 4
      %s31 = int_to_ptr.vmem [resolvable:$true] %s30
      %36 = dma.hbm_to_vmem [thread:$0]  %s29, 2048, %s31, [#allocation6], 128, 128, 8
    $region9: #{tpu_custom_call.1} parent=1 // pred_fallthru
      _
    // Predicated region
    $region10: #{tpu_custom_call.1} parent=1 // pred_check
      _
    $region11: #{tpu_custom_call.1} parent=1 // pred_check_branch
      %38 = sbr.rel (0) target = $region13
    $region12: #{tpu_custom_call.1} parent=1 // pred_region
      _
    $region13: #{tpu_custom_call.1} parent=1 // pred_fallthru
      _
    // Predicated region
    $region14: #{tpu_custom_call.1} parent=1 // pred_check
      _
    $region15: #{tpu_custom_call.1} parent=1 // pred_check_branch
      %40 = sbr.rel (0) target = $region17
    $region16: #{tpu_custom_call.1} parent=1 // pred_region
      %42 = dma.done [#allocation3], 256
    $region17: #{tpu_custom_call.1} parent=1 // pred_fallthru
      _
    // Predicated region
    $region18: #{tpu_custom_call.1} parent=1 // pred_check
      _
    $region19: #{tpu_custom_call.1} parent=1 // pred_check_branch
      %44 = sbr.rel (0) target = $region21
    $region20: #{tpu_custom_call.1} parent=1 // pred_region
      %46 = dma.done [#allocation6], 2048
    $region21: #{tpu_custom_call.1} parent=1 // pred_fallthru
      _
    %v47 = vld [vmem:[#allocation2] sm:$0xff]
    %v48 = vld [vmem:[#allocation2 + $0x8] sm:$0xff]
    %v49 = vld [vmem:[#allocation5] sm:$0xff]
    %v50 = vld [vmem:[#allocation5 + $0x8] sm:$0xff]
    %v51 = vld [vmem:[#allocation5 + $0x10] sm:$0xff]
    %v52 = vld [vmem:[#allocation5 + $0x18] sm:$0xff]
    %v53 = vld [vmem:[#allocation5 + $0x20] sm:$0xff]
    %v54 = vld [vmem:[#allocation5 + $0x28] sm:$0xff]
    %v55 = vld [vmem:[#allocation5 + $0x30] sm:$0xff]
    %v56 = vld [vmem:[#allocation5 + $0x38] sm:$0xff]
    %v57 = vld [vmem:[#allocation5 + $0x40] sm:$0xff]
    %v58 = vld [vmem:[#allocation5 + $0x48] sm:$0xff]
    %v59 = vld [vmem:[#allocation5 + $0x50] sm:$0xff]
    %v60 = vld [vmem:[#allocation5 + $0x58] sm:$0xff]
    %v61 = vld [vmem:[#allocation5 + $0x60] sm:$0xff]
    %v62 = vld [vmem:[#allocation5 + $0x68] sm:$0xff]
    %v63 = vld [vmem:[#allocation5 + $0x70] sm:$0xff]
    %v64 = vld [vmem:[#allocation5 + $0x78] sm:$0xff]
    %v65 = vld [vmem:[%s2] sm:$0x1]
    %v67 = vperm.slane %v65, 0
    %69 = vmatpush.xpose.msra.mxu0 %v64
    %70 = vmatpush.xpose.msra.mxu0 %v63
    %71 = vmatpush.xpose.msra.mxu0 %v62
    %72 = vmatpush.xpose.msra.mxu0 %v61
    %73 = vmatpush.xpose.msra.mxu0 %v60
    %74 = vmatpush.xpose.msra.mxu0 %v59
    %75 = vmatpush.xpose.msra.mxu0 %v58
    %76 = vmatpush.xpose.msra.mxu0 %v57
    %77 = vmatpush.xpose.msra.mxu0 %v56
    %78 = vmatpush.xpose.msra.mxu0 %v55
    %79 = vmatpush.xpose.msra.mxu0 %v54
    %80 = vmatpush.xpose.msra.mxu0 %v53
    %81 = vmatpush.xpose.msra.mxu0 %v52
    %82 = vmatpush.xpose.msra.mxu0 %v51
    %83 = vmatpush.xpose.msra.mxu0 %v50
    %84 = vmatpush.xpose.msra.mxu0 %v49
    %85 = vmatmul.f32.gmra.mxu0 %v47
    %v86 = vpop.f32.mrf.mxu0
    %v87 = vadd.f32 %v67, %v86
    %88 = vmatmul.f32.gmra.mxu0 %v48
    %v89 = vpop.f32.mrf.mxu0
    %v90 = vadd.f32 %v67, %v89
    %91 = vdwg.mxu0
    %92 = vst [vmem:[#allocation7] sm:$0xff] %v87
    %93 = vst [vmem:[#allocation7 + $0x8] sm:$0xff] %v90
    // Predicated region
    $region22: #{tpu_custom_call.1} parent=1 // pred_check
      _
    $region23: #{tpu_custom_call.1} parent=1 // pred_check_branch
      %95 = sbr.rel (0) target = $region25
    $region24: #{tpu_custom_call.1} parent=1 // pred_region
      %97 = vsyncadd [#allocation4], 0
      %s98 = sshll.u32 [#allocation7], 4
      %s99 = int_to_ptr.vmem [resolvable:$true] %s98
      %s100 = sshll.u32 %s3, 4
      %s101 = int_to_ptr.hbm [resolvable:$true] %s100
      %106 = dma.vmem_to_hbm [thread:$0]  %s99, 256, %s101, [#allocation4], 128, 128, 8
    $region25: #{tpu_custom_call.1} parent=1 // pred_fallthru
      _
    // Predicated region
    $region26: #{tpu_custom_call.1} parent=1 // pred_check
      _
    $region27: #{tpu_custom_call.1} parent=1 // pred_check_branch
      %108 = sbr.rel (0) target = $region29
    $region28: #{tpu_custom_call.1} parent=1 // pred_region
      %110 = dma.done [#allocation4], 256
    $region29: #{tpu_custom_call.1} parent=1 // pred_fallthru
      _
    %111 = vsyncpa [#allocation3], 1
    %112 = vsyncpa [#allocation6], 1
    %113 = vsyncpa [#allocation4], 1

</llo_original>
